<compile_context>
chip_gen: v6e
topology: v6e:2x2x1
jax: 0.10.0
libtpu: 0.0.40
codegen_flags: <defaults>
</compile_context>

<pallas_src>
import numpy as np
import jax
import jax.numpy as jnp
from jax import lax
from jax.experimental import pallas as pl
from jax.experimental.pallas import tpu as pltpu

H0 = 89
H1, H2, H3 = 45, 23, 12      # conv output heights: floor((H + 2 - 3) / 2) + 1
C1, C2, C3 = 16, 32, 64
W_OUT = 2                    # conv output width (kernel width 1, W padding 1, stride 2)
TILE_N = 2048                # lane-dense output tile (multiple of 128)


def _conv_relu(pad_ref, h_out, w_ref, b_ref):
    """Conv2d((3,1), stride=2, pad=1) + ReLU on one W-column.

    pad_ref : (h_in + 2, c_in) H-padded input column (rows 0 and h_in+1 are zero).
    w_ref   : (3, c_in, c_out) per-tap weights.
    b_ref   : (1, c_out) bias.
    Returns (h_out, c_out) f32.
    """
    c_out = w_ref.shape[2]
    acc = jnp.zeros((h_out, c_out), jnp.float32)
    for kh in range(3):                               # static unroll over the 3 taps
        tap = pad_ref[pl.ds(kh, h_out, stride=2), :]  # stride-2 sublane gather
        acc = acc + jnp.dot(tap, w_ref[kh], preferred_element_type=jnp.float32)
    return jnp.maximum(acc + b_ref[...], 0.0)


def basenet_kernel(b1_ref, w2_ref, b2_ref, w3_ref, b3_ref, fcw_ref, fcb_ref,
                   out_ref, pad1, pad2):
    # Conv1: both output W-columns sample only W-padding -> relu(b1); x is never read.
    a1 = jnp.maximum(b1_ref[...], 0.0)                          # (1, C1)

    # Conv2, W-column 1 (its input is conv1's column 1 = a1 at every valid H row).
    pad1[...] = jnp.zeros_like(pad1)
    pad1[pl.ds(1, H1), :] = jnp.broadcast_to(a1, (H1, C1))
    c2 = _conv_relu(pad1, H2, w2_ref, b2_ref)                   # (H2, C2)

    # Conv3, W-column 1 (input = conv2's column 1).
    pad2[...] = jnp.zeros_like(pad2)
    pad2[pl.ds(1, H2), :] = c2
    c3 = _conv_relu(pad2, H3, w3_ref, b3_ref)                   # (H3, C3)

    # Conv3's W-column 0 has statically-zero input -> relu(b3) at every H row.
    r3 = jnp.maximum(b3_ref[...], 0.0)                          # (1, C3)

    # GlobalAvgPool2d over (H3, W_OUT): sublane reduce + the constant column's sum.
    pooled = (jnp.sum(c3, axis=0, keepdims=True) + H3 * r3) * (1.0 / (H3 * W_OUT))

    # FlattenLayer + Linear(64 -> 1): lane multiply-reduce; fc bias read from SMEM.
    y = jnp.sum(pooled * fcw_ref[...], axis=1, keepdims=True) + fcb_ref[0, 0]  # (1,1)

    # Every sample gets the same score (the net is x-independent); lane-dense store.
    out_ref[...] = jnp.broadcast_to(y, out_ref.shape)


# ---------------------------- wrapper / parameters ----------------------------

def _conv_taps(w):   # (c_out, c_in, 3, 1) -> (3, c_in, c_out)
    return jnp.transpose(w[:, :, :, 0], (2, 1, 0))


def init_params(key):
    ks = jax.random.split(key, 8)
    nrm = lambda k, shape, s: jax.random.normal(k, shape, jnp.float32) * s
    return {
        "conv1_w": nrm(ks[0], (C1, 1, 3, 1), 0.3), "conv1_b": nrm(ks[1], (C1,), 0.1),
        "conv2_w": nrm(ks[2], (C2, C1, 3, 1), 0.1), "conv2_b": nrm(ks[3], (C2,), 0.1),
        "conv3_w": nrm(ks[4], (C3, C2, 3, 1), 0.1), "conv3_b": nrm(ks[5], (C3,), 0.1),
        "fc_w": nrm(ks[6], (1, C3), 0.1), "fc_b": nrm(ks[7], (1,), 0.1),
    }


def basenet_forward(x, params):
    # PyTorch: x.reshape(-1, 1, 89, 1).  Only the batch size is needed here: the
    # (3,1) convolutions with W=1 never read x (see kernel header note), so x is
    # not even passed to the kernel (zero HBM traffic for it).
    n = int(np.prod(x.shape)) // H0
    num_tiles = pl.cdiv(n, TILE_N)
    n_pad = num_tiles * TILE_N

    args = (
        params["conv1_b"].reshape(1, C1).astype(jnp.float32),
        _conv_taps(params["conv2_w"]).astype(jnp.float32),
        params["conv2_b"].reshape(1, C2).astype(jnp.float32),
        _conv_taps(params["conv3_w"]).astype(jnp.float32),
        params["conv3_b"].reshape(1, C3).astype(jnp.float32),
        params["fc_w"].reshape(1, C3).astype(jnp.float32),
        params["fc_b"].reshape(1, 1).astype(jnp.float32),
    )

    grid_spec = pltpu.PrefetchScalarGridSpec(
        num_scalar_prefetch=0,
        grid=(num_tiles,),
        in_specs=[
            pl.BlockSpec((1, C1), lambda i: (0, 0)),            # conv1 bias
            pl.BlockSpec((3, C1, C2), lambda i: (0, 0, 0)),     # conv2 taps (resident)
            pl.BlockSpec((1, C2), lambda i: (0, 0)),            # conv2 bias
            pl.BlockSpec((3, C2, C3), lambda i: (0, 0, 0)),     # conv3 taps (resident)
            pl.BlockSpec((1, C3), lambda i: (0, 0)),            # conv3 bias
            pl.BlockSpec((1, C3), lambda i: (0, 0)),            # fc weight row
            pl.BlockSpec(memory_space=pltpu.MemorySpace.SMEM),  # fc bias scalar
        ],
        out_specs=pl.BlockSpec((1, TILE_N), lambda i: (0, i)),
        scratch_shapes=[
            pltpu.VMEM((H1 + 2, C1), jnp.float32),   # H-padded conv1 output column
            pltpu.VMEM((H2 + 2, C2), jnp.float32),   # H-padded conv2 output column
        ],
    )

    out = pl.pallas_call(
        basenet_kernel,
        out_shape=jax.ShapeDtypeStruct((1, n_pad), jnp.float32),
        grid_spec=grid_spec,
        compiler_params=pltpu.CompilerParams(
            dimension_semantics=("parallel",)),      # megacore-shardable on v7x
    )(*args)

    # Lane-dense kernel output -> PyTorch-shaped (N, 1) result.
    return out[0, :n].reshape(n, 1)


def reference_forward(x, params):
    h = x.reshape(-1, 1, H0, 1).astype(jnp.float32)     # NCHW, like PyTorch
    for wn, bn in (("conv1_w", "conv1_b"), ("conv2_w", "conv2_b"), ("conv3_w", "conv3_b")):
        h = lax.conv_general_dilated(h, params[wn], window_strides=(2, 2),
                                     padding=((1, 1), (1, 1)),
                                     dimension_numbers=("NCHW", "OIHW", "NCHW"))
        h = jnp.maximum(h + params[bn].reshape(1, -1, 1, 1), 0.0)
    pooled = jnp.mean(h, axis=(2, 3))                   # GlobalAvgPool2d + Flatten
    return pooled @ params["fc_w"].T + params["fc_b"]


if __name__ == "__main__":
    key = jax.random.PRNGKey(0)
    pkey, xkey = jax.random.split(key)
    params = init_params(pkey)
    # small batch; PyTorch forward reshapes input to (-1, 1, 89, 1)
    x = jax.random.normal(xkey, (2, 89), jnp.float32)

    out = jax.block_until_ready(basenet_forward(x, params))
    ref = jax.block_until_ready(reference_forward(x, params))
    np.testing.assert_allclose(np.asarray(out), np.asarray(ref), rtol=1e-4, atol=1e-4)
    print("KERNEL_OK")
</pallas_src>

<mosaic_0001>
module attributes {stable_mosaic.version = 11 : i64} {
  func.func @basenet_kernel(%arg0: i32, %arg1: memref<1x16xf32, #tpu.memory_space<vmem>>, %arg2: memref<3x16x32xf32, #tpu.memory_space<vmem>>, %arg3: memref<1x32xf32, #tpu.memory_space<vmem>>, %arg4: memref<3x32x64xf32, #tpu.memory_space<vmem>>, %arg5: memref<1x64xf32, #tpu.memory_space<vmem>>, %arg6: memref<1x64xf32, #tpu.memory_space<vmem>>, %arg7: memref<1x1xf32, #tpu.memory_space<smem>>, %arg8: memref<1x2048xf32, #tpu.memory_space<vmem>>, %arg9: memref<47x16xf32, #tpu.memory_space<vmem>>, %arg10: memref<25x32xf32, #tpu.memory_space<vmem>>) attributes {dimension_semantics = [#tpu.dimension_semantics<parallel>], iteration_bounds = array<i64: 1>, scalar_prefetch = 0 : i64, scratch_operands = 2 : i64, tpu.core_type = #tpu.core_type<tc>, window_params = [{pipeline_mode = #tpu.pipeline_mode<synchronous>, transform_indices = @transform_0, window_bounds = array<i64: 1, 16>}, {pipeline_mode = #tpu.pipeline_mode<synchronous>, transform_indices = @transform_1, window_bounds = array<i64: 3, 16, 32>}, {pipeline_mode = #tpu.pipeline_mode<synchronous>, transform_indices = @transform_2, window_bounds = array<i64: 1, 32>}, {pipeline_mode = #tpu.pipeline_mode<synchronous>, transform_indices = @transform_3, window_bounds = array<i64: 3, 32, 64>}, {pipeline_mode = #tpu.pipeline_mode<synchronous>, transform_indices = @transform_4, window_bounds = array<i64: 1, 64>}, {pipeline_mode = #tpu.pipeline_mode<synchronous>, transform_indices = @transform_5, window_bounds = array<i64: 1, 64>}, {transform_indices = @transform_6, window_bounds = array<i64: 1, 1>}, {transform_indices = @transform_7, window_bounds = array<i64: 1, 2048>}]} {
    %c0 = arith.constant 0 : index
    %c0_0 = arith.constant 0 : index
    %0 = vector.load %arg1[%c0, %c0_0] : memref<1x16xf32, #tpu.memory_space<vmem>>, vector<1x16xf32>
    %cst = arith.constant 0.000000e+00 : f32
    %1 = vector.broadcast %cst : f32 to vector<1x16xf32>
    %2 = arith.maximumf %0, %1 : vector<1x16xf32>
    %cst_1 = arith.constant 0.000000e+00 : f32
    %3 = vector.broadcast %cst_1 : f32 to vector<47x16xf32>
    %c0_2 = arith.constant 0 : index
    %c0_3 = arith.constant 0 : index
    %4 = vector.load %arg9[%c0_2, %c0_3] : memref<47x16xf32, #tpu.memory_space<vmem>>, vector<47x16xf32>
    tpu.vector_store %arg9[%c0_2, %c0_3], %3 {strides = array<i32>} : memref<47x16xf32, #tpu.memory_space<vmem>>, vector<47x16xf32>,
    %5 = vector.shape_cast %2 : vector<1x16xf32> to vector<1x16xf32>
    %6 = vector.broadcast %5 : vector<1x16xf32> to vector<45x16xf32>
    %c1 = arith.constant 1 : index
    %c0_4 = arith.constant 0 : index
    %7 = vector.load %arg9[%c1, %c0_4] : memref<47x16xf32, #tpu.memory_space<vmem>>, vector<45x16xf32>
    tpu.vector_store %arg9[%c1, %c0_4], %6 {strides = array<i32>} : memref<47x16xf32, #tpu.memory_space<vmem>>, vector<45x16xf32>,
    %cst_5 = arith.constant 0.000000e+00 : f32
    %8 = vector.broadcast %cst_5 : f32 to vector<23x32xf32>
    %c0_6 = arith.constant 0 : index
    %c0_7 = arith.constant 0 : index
    %9 = tpu.strided_load %arg9[%c0_6, %c0_7] {strides = array<i32: 2, 1>} : memref<47x16xf32, #tpu.memory_space<vmem>>, vector<23x16xf32>
    %c0_8 = arith.constant 0 : index
    %c0_9 = arith.constant 0 : index
    %c0_10 = arith.constant 0 : index
    %10 = vector.load %arg2[%c0_8, %c0_9, %c0_10] : memref<3x16x32xf32, #tpu.memory_space<vmem>>, vector<1x16x32xf32>
    %11 = vector.shape_cast %10 : vector<1x16x32xf32> to vector<16x32xf32>
    %cst_11 = arith.constant dense<0.000000e+00> : vector<23x32xf32>
    %12 = tpu.matmul %9, %11, %cst_11 {dimension_numbers = #tpu.dot_dimension_numbers<[1], [0], [0], [1], [0, 0, 1, 1], [], []>} : vector<23x16xf32>, vector<16x32xf32>, vector<23x32xf32> -> vector<23x32xf32>
    %13 = arith.addf %8, %12 : vector<23x32xf32>
    %c1_12 = arith.constant 1 : index
    %c0_13 = arith.constant 0 : index
    %14 = tpu.strided_load %arg9[%c1_12, %c0_13] {strides = array<i32: 2, 1>} : memref<47x16xf32, #tpu.memory_space<vmem>>, vector<23x16xf32>
    %c1_14 = arith.constant 1 : index
    %c0_15 = arith.constant 0 : index
    %c0_16 = arith.constant 0 : index
    %15 = vector.load %arg2[%c1_14, %c0_15, %c0_16] : memref<3x16x32xf32, #tpu.memory_space<vmem>>, vector<1x16x32xf32>
    %16 = vector.shape_cast %15 : vector<1x16x32xf32> to vector<16x32xf32>
    %cst_17 = arith.constant dense<0.000000e+00> : vector<23x32xf32>
    %17 = tpu.matmul %14, %16, %cst_17 {dimension_numbers = #tpu.dot_dimension_numbers<[1], [0], [0], [1], [0, 0, 1, 1], [], []>} : vector<23x16xf32>, vector<16x32xf32>, vector<23x32xf32> -> vector<23x32xf32>
    %18 = arith.addf %13, %17 : vector<23x32xf32>
    %c2 = arith.constant 2 : index
    %c0_18 = arith.constant 0 : index
    %19 = tpu.strided_load %arg9[%c2, %c0_18] {strides = array<i32: 2, 1>} : memref<47x16xf32, #tpu.memory_space<vmem>>, vector<23x16xf32>
    %c2_19 = arith.constant 2 : index
    %c0_20 = arith.constant 0 : index
    %c0_21 = arith.constant 0 : index
    %20 = vector.load %arg2[%c2_19, %c0_20, %c0_21] : memref<3x16x32xf32, #tpu.memory_space<vmem>>, vector<1x16x32xf32>
    %21 = vector.shape_cast %20 : vector<1x16x32xf32> to vector<16x32xf32>
    %cst_22 = arith.constant dense<0.000000e+00> : vector<23x32xf32>
    %22 = tpu.matmul %19, %21, %cst_22 {dimension_numbers = #tpu.dot_dimension_numbers<[1], [0], [0], [1], [0, 0, 1, 1], [], []>} : vector<23x16xf32>, vector<16x32xf32>, vector<23x32xf32> -> vector<23x32xf32>
    %23 = arith.addf %18, %22 : vector<23x32xf32>
    %c0_23 = arith.constant 0 : index
    %c0_24 = arith.constant 0 : index
    %24 = vector.load %arg3[%c0_23, %c0_24] : memref<1x32xf32, #tpu.memory_space<vmem>>, vector<1x32xf32>
    %25 = vector.broadcast %24 : vector<1x32xf32> to vector<23x32xf32>
    %26 = arith.addf %23, %25 : vector<23x32xf32>
    %cst_25 = arith.constant 0.000000e+00 : f32
    %27 = vector.broadcast %cst_25 : f32 to vector<23x32xf32>
    %28 = arith.maximumf %26, %27 : vector<23x32xf32>
    %cst_26 = arith.constant 0.000000e+00 : f32
    %29 = vector.broadcast %cst_26 : f32 to vector<25x32xf32>
    %c0_27 = arith.constant 0 : index
    %c0_28 = arith.constant 0 : index
    %30 = vector.load %arg10[%c0_27, %c0_28] : memref<25x32xf32, #tpu.memory_space<vmem>>, vector<25x32xf32>
    tpu.vector_store %arg10[%c0_27, %c0_28], %29 {strides = array<i32>} : memref<25x32xf32, #tpu.memory_space<vmem>>, vector<25x32xf32>,
    %c1_29 = arith.constant 1 : index
    %c0_30 = arith.constant 0 : index
    %31 = vector.load %arg10[%c1_29, %c0_30] : memref<25x32xf32, #tpu.memory_space<vmem>>, vector<23x32xf32>
    tpu.vector_store %arg10[%c1_29, %c0_30], %28 {strides = array<i32>} : memref<25x32xf32, #tpu.memory_space<vmem>>, vector<23x32xf32>,
    %cst_31 = arith.constant 0.000000e+00 : f32
    %32 = vector.broadcast %cst_31 : f32 to vector<12x64xf32>
    %c0_32 = arith.constant 0 : index
    %c0_33 = arith.constant 0 : index
    %33 = tpu.strided_load %arg10[%c0_32, %c0_33] {strides = array<i32: 2, 1>} : memref<25x32xf32, #tpu.memory_space<vmem>>, vector<12x32xf32>
    %c0_34 = arith.constant 0 : index
    %c0_35 = arith.constant 0 : index
    %c0_36 = arith.constant 0 : index
    %34 = vector.load %arg4[%c0_34, %c0_35, %c0_36] : memref<3x32x64xf32, #tpu.memory_space<vmem>>, vector<1x32x64xf32>
    %35 = vector.shape_cast %34 : vector<1x32x64xf32> to vector<32x64xf32>
    %cst_37 = arith.constant dense<0.000000e+00> : vector<12x64xf32>
    %36 = tpu.matmul %33, %35, %cst_37 {dimension_numbers = #tpu.dot_dimension_numbers<[1], [0], [0], [1], [0, 0, 1, 1], [], []>} : vector<12x32xf32>, vector<32x64xf32>, vector<12x64xf32> -> vector<12x64xf32>
    %37 = arith.addf %32, %36 : vector<12x64xf32>
    %c1_38 = arith.constant 1 : index
    %c0_39 = arith.constant 0 : index
    %38 = tpu.strided_load %arg10[%c1_38, %c0_39] {strides = array<i32: 2, 1>} : memref<25x32xf32, #tpu.memory_space<vmem>>, vector<12x32xf32>
    %c1_40 = arith.constant 1 : index
    %c0_41 = arith.constant 0 : index
    %c0_42 = arith.constant 0 : index
    %39 = vector.load %arg4[%c1_40, %c0_41, %c0_42] : memref<3x32x64xf32, #tpu.memory_space<vmem>>, vector<1x32x64xf32>
    %40 = vector.shape_cast %39 : vector<1x32x64xf32> to vector<32x64xf32>
    %cst_43 = arith.constant dense<0.000000e+00> : vector<12x64xf32>
    %41 = tpu.matmul %38, %40, %cst_43 {dimension_numbers = #tpu.dot_dimension_numbers<[1], [0], [0], [1], [0, 0, 1, 1], [], []>} : vector<12x32xf32>, vector<32x64xf32>, vector<12x64xf32> -> vector<12x64xf32>
    %42 = arith.addf %37, %41 : vector<12x64xf32>
    %c2_44 = arith.constant 2 : index
    %c0_45 = arith.constant 0 : index
    %43 = tpu.strided_load %arg10[%c2_44, %c0_45] {strides = array<i32: 2, 1>} : memref<25x32xf32, #tpu.memory_space<vmem>>, vector<12x32xf32>
    %c2_46 = arith.constant 2 : index
    %c0_47 = arith.constant 0 : index
    %c0_48 = arith.constant 0 : index
    %44 = vector.load %arg4[%c2_46, %c0_47, %c0_48] : memref<3x32x64xf32, #tpu.memory_space<vmem>>, vector<1x32x64xf32>
    %45 = vector.shape_cast %44 : vector<1x32x64xf32> to vector<32x64xf32>
    %cst_49 = arith.constant dense<0.000000e+00> : vector<12x64xf32>
    %46 = tpu.matmul %43, %45, %cst_49 {dimension_numbers = #tpu.dot_dimension_numbers<[1], [0], [0], [1], [0, 0, 1, 1], [], []>} : vector<12x32xf32>, vector<32x64xf32>, vector<12x64xf32> -> vector<12x64xf32>
    %47 = arith.addf %42, %46 : vector<12x64xf32>
    %c0_50 = arith.constant 0 : index
    %c0_51 = arith.constant 0 : index
    %48 = vector.load %arg5[%c0_50, %c0_51] : memref<1x64xf32, #tpu.memory_space<vmem>>, vector<1x64xf32>
    %49 = vector.broadcast %48 : vector<1x64xf32> to vector<12x64xf32>
    %50 = arith.addf %47, %49 : vector<12x64xf32>
    %cst_52 = arith.constant 0.000000e+00 : f32
    %51 = vector.broadcast %cst_52 : f32 to vector<12x64xf32>
    %52 = arith.maximumf %50, %51 : vector<12x64xf32>
    %c0_53 = arith.constant 0 : index
    %c0_54 = arith.constant 0 : index
    %53 = vector.load %arg5[%c0_53, %c0_54] : memref<1x64xf32, #tpu.memory_space<vmem>>, vector<1x64xf32>
    %cst_55 = arith.constant 0.000000e+00 : f32
    %54 = vector.broadcast %cst_55 : f32 to vector<1x64xf32>
    %55 = arith.maximumf %53, %54 : vector<1x64xf32>
    %cst_56 = arith.constant dense<0.000000e+00> : vector<64xf32>
    %56 = vector.multi_reduction <add>, %52, %cst_56 [0] : vector<12x64xf32> to vector<64xf32>
    %57 = vector.shape_cast %56 : vector<64xf32> to vector<1x64xf32>
    %cst_57 = arith.constant 1.200000e+01 : f32
    %58 = vector.broadcast %cst_57 : f32 to vector<1x64xf32>
    %59 = arith.mulf %58, %55 : vector<1x64xf32>
    %60 = arith.addf %57, %59 : vector<1x64xf32>
    %cst_58 = arith.constant 0.0416666679 : f32
    %61 = vector.broadcast %cst_58 : f32 to vector<1x64xf32>
    %62 = arith.mulf %60, %61 : vector<1x64xf32>
    %c0_59 = arith.constant 0 : index
    %c0_60 = arith.constant 0 : index
    %63 = vector.load %arg6[%c0_59, %c0_60] : memref<1x64xf32, #tpu.memory_space<vmem>>, vector<1x64xf32>
    %64 = arith.mulf %62, %63 : vector<1x64xf32>
    %cst_61 = arith.constant dense<0.000000e+00> : vector<1xf32>
    %65 = vector.multi_reduction <add>, %64, %cst_61 [1] : vector<1x64xf32> to vector<1xf32>
    %66 = vector.shape_cast %65 : vector<1xf32> to vector<1x1xf32>
    %c0_62 = arith.constant 0 : index
    %c0_63 = arith.constant 0 : index
    %67 = memref.load %arg7[%c0_62, %c0_63] : memref<1x1xf32, #tpu.memory_space<smem>>
    %68 = vector.broadcast %67 : f32 to vector<1x1xf32>
    %69 = arith.addf %66, %68 : vector<1x1xf32>
    %70 = vector.shape_cast %69 : vector<1x1xf32> to vector<1x1xf32>
    %71 = vector.broadcast %70 : vector<1x1xf32> to vector<1x2048xf32>
    %c0_64 = arith.constant 0 : index
    %c0_65 = arith.constant 0 : index
    %72 = vector.load %arg8[%c0_64, %c0_65] : memref<1x2048xf32, #tpu.memory_space<vmem>>, vector<1x2048xf32>
    tpu.vector_store %arg8[%c0_64, %c0_65], %71 {strides = array<i32>} : memref<1x2048xf32, #tpu.memory_space<vmem>>, vector<1x2048xf32>,
    return
  }
  func.func @transform_0(%arg0: i32) -> (i32, i32) {
    %c0_i32 = arith.constant 0 : i32
    %c0_i32_0 = arith.constant 0 : i32
    %c0_i32_1 = arith.constant 0 : i32
    return %c0_i32, %c0_i32_0 : i32, i32
  }
  func.func @transform_1(%arg0: i32) -> (i32, i32, i32) {
    %c0_i32 = arith.constant 0 : i32
    %c0_i32_0 = arith.constant 0 : i32
    %c0_i32_1 = arith.constant 0 : i32
    %c0_i32_2 = arith.constant 0 : i32
    return %c0_i32, %c0_i32_0, %c0_i32_1 : i32, i32, i32
  }
  func.func @transform_2(%arg0: i32) -> (i32, i32) {
    %c0_i32 = arith.constant 0 : i32
    %c0_i32_0 = arith.constant 0 : i32
    %c0_i32_1 = arith.constant 0 : i32
    return %c0_i32, %c0_i32_0 : i32, i32
  }
  func.func @transform_3(%arg0: i32) -> (i32, i32, i32) {
    %c0_i32 = arith.constant 0 : i32
    %c0_i32_0 = arith.constant 0 : i32
    %c0_i32_1 = arith.constant 0 : i32
    %c0_i32_2 = arith.constant 0 : i32
    return %c0_i32, %c0_i32_0, %c0_i32_1 : i32, i32, i32
  }
  func.func @transform_4(%arg0: i32) -> (i32, i32) {
    %c0_i32 = arith.constant 0 : i32
    %c0_i32_0 = arith.constant 0 : i32
    %c0_i32_1 = arith.constant 0 : i32
    return %c0_i32, %c0_i32_0 : i32, i32
  }
  func.func @transform_5(%arg0: i32) -> (i32, i32) {
    %c0_i32 = arith.constant 0 : i32
    %c0_i32_0 = arith.constant 0 : i32
    %c0_i32_1 = arith.constant 0 : i32
    return %c0_i32, %c0_i32_0 : i32, i32
  }
  func.func @transform_6(%arg0: i32) -> (i32, i32) {
    %c0_i32 = arith.constant 0 : i32
    %c0_i32_0 = arith.constant 0 : i32
    %c0_i32_1 = arith.constant 0 : i32
    return %c0_i32, %c0_i32_0 : i32, i32
  }
  func.func @transform_7(%arg0: i32) -> (i32, i32) {
    %c0_i32 = arith.constant 0 : i32
    %c0_i32_0 = arith.constant 0 : i32
    return %c0_i32, %arg0 : i32, i32
  }
}

</mosaic_0001>

<llo_original>
// kernel: tpu_custom_call.1
$region0: #{tpu_custom_call.1}
  #allocation0 [shape = 'u32[]', space=smem, size = 0x4, offset = 0x4, fixed_abs, tag = 'smem constant byte address 0x4 - core index']
  #allocation1 [shape = 'u32[144,128]{1,0:T(1,128)}', space=vmem, size = 0x12000, scoped, tag = 'internal scratch']
  #allocation2 [shape = 'f32[47,16]{1,0:T(8,128)}', space=vmem, size = 0x6000, scoped, tag = 'scratch operand']
  #allocation3 [shape = 'f32[25,32]{1,0:T(8,128)}', space=vmem, size = 0x4000, scoped, tag = 'scratch operand']
  #allocation4 [shape = 'f32[1,1]{1,0:T(1,128)S(6)}', space=smem, size = 0x200, scoped, tag = 'scoped memory for tpu_custom_call.1']
  %s0 = inlined_call_operand.vmem [shape: f32[1,16], index: 0, kind: input, shape index: {}]
  %s1 = inlined_call_operand.hbm [shape: f32[3,16,32], index: 1, kind: input, shape index: {}]
  %s2 = inlined_call_operand.vmem [shape: f32[1,32], index: 2, kind: input, shape index: {}]
  %s3 = inlined_call_operand.hbm [shape: f32[3,32,64], index: 3, kind: input, shape index: {}]
  %s4 = inlined_call_operand.vmem [shape: f32[1,64], index: 4, kind: input, shape index: {}]
  %s5 = inlined_call_operand.vmem [shape: f32[1,64], index: 5, kind: input, shape index: {}]
  %s6 = inlined_call_operand.<no memory space> [shape: f32[1,1], index: 6, kind: input, shape index: {}]
  %s7 = inlined_call_operand.hbm [shape: f32[1,2048], index: 7, kind: output, shape index: {}]
  %s8 = sld [smem:[#allocation0]]
  $region46: #{tpu_custom_call.1} parent=0
    _
  %s10 = ssub.s32 1, %s8
  %s11 = scalar_select 0, %s10, %s8
  %12 = sst [smem:[#allocation4]] %s6
  $region1: #{tpu_custom_call.1} parent=0
    #allocation5 [shape = 'u8[24576]{0}', space=vmem, size = 0x6000, scoped, tag = 'input window, operand 1, single buffered']
    #allocation6 [shape = 's32[1]{0}', space=sflag, size = 0x4, scoped, tag = 'scoped memory for tpu_custom_call.1']
    #allocation7 [shape = 's32[1]{0}', space=sflag, size = 0x4, scoped, tag = 'scoped memory for tpu_custom_call.1']
    #allocation8 [shape = 'u8[49152]{0}', space=vmem, size = 0xc000, scoped, tag = 'input window, operand 3, single buffered']
    #allocation9 [shape = 's32[1]{0}', space=sflag, size = 0x4, scoped, tag = 'scoped memory for tpu_custom_call.1']
    #allocation10 [shape = 'u8[8192]{0}', space=vmem, size = 0x2000, scoped, tag = 'output window, operand 0, single buffered']
    %13 = vsyncpa [#allocation6], 0
    %14 = vsyncpa [#allocation9], 0
    %15 = vsyncpa [#allocation7], 0
    // Predicated region
    $region2: #{tpu_custom_call.1} parent=1 // pred_check
      _
    $region3: #{tpu_custom_call.1} parent=1 // pred_check_branch
      %17 = sbr.rel (0) target = $region5
    $region4: #{tpu_custom_call.1} parent=1 // pred_region
      _
    $region5: #{tpu_custom_call.1} parent=1 // pred_fallthru
      _
    // Predicated region
    $region6: #{tpu_custom_call.1} parent=1 // pred_check
      _
    $region7: #{tpu_custom_call.1} parent=1 // pred_check_branch
      %19 = sbr.rel (0) target = $region9
    $region8: #{tpu_custom_call.1} parent=1 // pred_region
      %s21 = ssub.s32 768, 768
      %22 = vsyncadd [#allocation6], %s21
      %s23 = sshll.u32 [#allocation5], 4
      %s24 = int_to_ptr.vmem [resolvable:$true] %s23
      %29 = dma.hbm_to_vmem [thread:$0]  %s1, 768, %s24, [#allocation6], 128, 128, 8
    $region9: #{tpu_custom_call.1} parent=1 // pred_fallthru
      _
    // Predicated region
    $region10: #{tpu_custom_call.1} parent=1 // pred_check
      _
    $region11: #{tpu_custom_call.1} parent=1 // pred_check_branch
      %31 = sbr.rel (0) target = $region13
    $region12: #{tpu_custom_call.1} parent=1 // pred_region
      _
    $region13: #{tpu_custom_call.1} parent=1 // pred_fallthru
      _
    // Predicated region
    $region14: #{tpu_custom_call.1} parent=1 // pred_check
      _
    $region15: #{tpu_custom_call.1} parent=1 // pred_check_branch
      %33 = sbr.rel (0) target = $region17
    $region16: #{tpu_custom_call.1} parent=1 // pred_region
      %s35 = ssub.s32 1536, 1536
      %36 = vsyncadd [#allocation9], %s35
      %s37 = sshll.u32 [#allocation8], 4
      %s38 = int_to_ptr.vmem [resolvable:$true] %s37
      %43 = dma.hbm_to_vmem [thread:$0]  %s3, 1536, %s38, [#allocation9], 128, 128, 8
    $region17: #{tpu_custom_call.1} parent=1 // pred_fallthru
      _
    // Predicated region
    $region18: #{tpu_custom_call.1} parent=1 // pred_check
      _
    $region19: #{tpu_custom_call.1} parent=1 // pred_check_branch
      %45 = sbr.rel (0) target = $region21
    $region20: #{tpu_custom_call.1} parent=1 // pred_region
      _
    $region21: #{tpu_custom_call.1} parent=1 // pred_fallthru
      _
    // Predicated region
    $region22: #{tpu_custom_call.1} parent=1 // pred_check
      _
    $region23: #{tpu_custom_call.1} parent=1 // pred_check_branch
      %47 = sbr.rel (0) target = $region25
    $region24: #{tpu_custom_call.1} parent=1 // pred_region
      _
    $region25: #{tpu_custom_call.1} parent=1 // pred_fallthru
      _
    // Predicated region
    $region26: #{tpu_custom_call.1} parent=1 // pred_check
      _
    $region27: #{tpu_custom_call.1} parent=1 // pred_check_branch
      %49 = sbr.rel (0) target = $region29
    $region28: #{tpu_custom_call.1} parent=1 // pred_region
      _
    $region29: #{tpu_custom_call.1} parent=1 // pred_fallthru
      _
    // Predicated region
    $region30: #{tpu_custom_call.1} parent=1 // pred_check
      _
    $region31: #{tpu_custom_call.1} parent=1 // pred_check_branch
      %51 = sbr.rel (0) target = $region33
    $region32: #{tpu_custom_call.1} parent=1 // pred_region
      %52 = dma.done [#allocation6], 768
    $region33: #{tpu_custom_call.1} parent=1 // pred_fallthru
      _
    // Predicated region
    $region34: #{tpu_custom_call.1} parent=1 // pred_check
      _
    $region35: #{tpu_custom_call.1} parent=1 // pred_check_branch
      %54 = sbr.rel (0) target = $region37
    $region36: #{tpu_custom_call.1} parent=1 // pred_region
      %55 = dma.done [#allocation9], 1536
    $region37: #{tpu_custom_call.1} parent=1 // pred_fallthru
      _
    %v56 = vld [vmem:[%s0] sm:$0x1]
    %v57 = vmax.f32 %v56, 0.0
    %vm58 = vcmask 130048
    %59 = vst.msk [vmem:[#allocation2] sm:$0xff] %vm58, 0.0
    %60 = vst.msk [vmem:[#allocation2 + $0x8] sm:$0xff] %vm58, 0.0
    %61 = vst.msk [vmem:[#allocation2 + $0x10] sm:$0xff] %vm58, 0.0
    %62 = vst.msk [vmem:[#allocation2 + $0x18] sm:$0xff] %vm58, 0.0
    %63 = vst.msk [vmem:[#allocation2 + $0x20] sm:$0xff] %vm58, 0.0
    %vm64 = vcmask 129024
    %65 = vst.msk [vmem:[#allocation2 + $0x28] sm:$0x7f] %vm64, 0.0
    %v67 = vlaneseq
    %v68 = vshrl.u32 %v67, 7
    %v69 = vsub.s32 0, %v68
    %v70 = vrot.slane %v57, %v69
    %72 = vst.msk [vmem:[#allocation2 + $0x1] sm:$0xff] %vm58, %v70
    %73 = vst.msk [vmem:[#allocation2 + $0x9] sm:$0xff] %vm58, %v70
    %74 = vst.msk [vmem:[#allocation2 + $0x11] sm:$0xff] %vm58, %v70
    %75 = vst.msk [vmem:[#allocation2 + $0x19] sm:$0xff] %vm58, %v70
    %76 = vst.msk [vmem:[#allocation2 + $0x21] sm:$0xff] %vm58, %v70
    %vm77 = vcmask 126976
    %78 = vst.msk [vmem:[#allocation2 + $0x29] sm:$0x1f] %vm77, %v70
    %v79 = vld [vmem:[#allocation2] ss:$2 sm:$0xff]
    %s80 = scalar_lea.vmem [#allocation2], 16
    %v81 = vld [vmem:[%s80] ss:$2 sm:$0xff]
    %s82 = scalar_lea.vmem [#allocation2], 32
    %v83 = vld [vmem:[%s82] ss:$2 sm:$0x7f]
    %v84 = vld [vmem:[#allocation5] sm:$0xff]
    %v85 = vld [vmem:[#allocation5 + $0x8] sm:$0xff]
    %s86 = scalar_lea.vmem [#allocation2], 1
    %v87 = vld [vmem:[%s86] ss:$2 sm:$0xff]
    %s88 = scalar_lea.vmem [#allocation2], 17
    %v89 = vld [vmem:[%s88] ss:$2 sm:$0xff]
    %s90 = scalar_lea.vmem [#allocation2], 33
    %v91 = vld [vmem:[%s90] ss:$2 sm:$0x7f]
    %s92 = scalar_lea.vmem [#allocation5], 16
    %v93 = vld [vmem:[%s92] sm:$0xff]
    %v94 = vld [vmem:[%s92 + $0x8] sm:$0xff]
    %v96 = vsel %vm58, %v87, 0
    %v99 = vsel %vm58, %v89, 0
    %v102 = vsel %vm58, %v91, 0
    %104 = vmatprep.subr.mxu0 0.0
    %105 = vmatpush1.msra.mxu0 0.0
    %106 = vmatprep.subr.mxu0 0.0
    %107 = vmatpush1.msra.mxu0 0.0
    %108 = vmatprep.subr.mxu0 0.0
    %109 = vmatpush1.msra.mxu0 0.0
    %110 = vmatprep.subr.mxu0 0.0
    %111 = vmatpush1.msra.mxu0 0.0
    %112 = vmatprep.subr.mxu0 0.0
    %113 = vmatpush1.msra.mxu0 0.0
    %114 = vmatprep.subr.mxu0 0.0
    %115 = vmatpush1.msra.mxu0 0.0
    %116 = vmatprep.subr.mxu0 0.0
    %117 = vmatpush1.msra.mxu0 0.0
    %118 = vmatprep.subr.mxu0 0.0
    %119 = vmatpush1.msra.mxu0 0.0
    %120 = vmatprep.subr.mxu0 0.0
    %121 = vmatpush1.msra.mxu0 0.0
    %122 = vmatprep.subr.mxu0 0.0
    %123 = vmatpush1.msra.mxu0 0.0
    %124 = vmatprep.subr.mxu0 0.0
    %125 = vmatpush1.msra.mxu0 0.0
    %126 = vmatprep.subr.mxu0 0.0
    %127 = vmatpush1.msra.mxu0 0.0
    %128 = vmatprep.subr.mxu0 0.0
    %129 = vmatpush1.msra.mxu0 0.0
    %130 = vmatprep.subr.mxu0 0.0
    %131 = vmatpush1.msra.mxu0 0.0
    %132 = vmatprep.subr.mxu0 0.0
    %133 = vmatpush1.msra.mxu0 %v94
    %134 = vmatprep.subr.mxu0 0.0
    %135 = vmatpush1.msra.mxu0 %v93
    %136 = vmatprep.subr.mxu0 0.0
    %137 = vmatpush2.msra.mxu0 0.0
    %138 = vmatprep.subr.mxu0 0.0
    %139 = vmatpush2.msra.mxu0 0.0
    %140 = vmatprep.subr.mxu0 0.0
    %141 = vmatpush2.msra.mxu0 0.0
    %142 = vmatprep.subr.mxu0 0.0
    %143 = vmatpush2.msra.mxu0 0.0
    %144 = vmatprep.subr.mxu0 0.0
    %145 = vmatpush2.msra.mxu0 0.0
    %146 = vmatprep.subr.mxu0 0.0
    %147 = vmatpush2.msra.mxu0 0.0
    %148 = vmatprep.subr.mxu0 0.0
    %149 = vmatpush2.msra.mxu0 0.0
    %150 = vmatprep.subr.mxu0 0.0
    %151 = vmatpush2.msra.mxu0 0.0
    %152 = vmatprep.subr.mxu0 0.0
    %153 = vmatpush2.msra.mxu0 0.0
    %154 = vmatprep.subr.mxu0 0.0
    %155 = vmatpush2.msra.mxu0 0.0
    %156 = vmatprep.subr.mxu0 0.0
    %157 = vmatpush2.msra.mxu0 0.0
    %158 = vmatprep.subr.mxu0 0.0
    %159 = vmatpush2.msra.mxu0 0.0
    %160 = vmatprep.subr.mxu0 0.0
    %161 = vmatpush2.msra.mxu0 0.0
    %162 = vmatprep.subr.mxu0 0.0
    %163 = vmatpush2.msra.mxu0 0.0
    %164 = vmatprep.subr.mxu0 0.0
    %165 = vmatpush2.msra.mxu0 0.0
    %166 = vmatprep.subr.mxu0 0.0
    %167 = vmatpush2.msra.mxu0 0.0
    %168 = vmatprep.mubr.f32.mxu0 0.0
    %169 = vmatmul.mubr.f32.gmra.mxu0 %v96
    %v170 = vpop.f32.mrf.mxu0
    %v171 = vadd.f32 0.0, %v170
    %v172 = vpop.f32.mrf.mxu0
    %173 = vmatprep.mubr.f32.mxu0 0.0
    %174 = vmatmul.mubr.f32.gmra.mxu0 %v99
    %v175 = vpop.f32.mrf.mxu0
    %v176 = vadd.f32 0.0, %v175
    %v177 = vpop.f32.mrf.mxu0
    %178 = vmatprep.mubr.f32.mxu0 0.0
    %179 = vmatmul.mubr.f32.gmra.mxu0 %v102
    %v180 = vpop.f32.mrf.mxu0
    %v181 = vadd.f32 0.0, %v180
    %v182 = vpop.f32.mrf.mxu0
    %183 = vdwg.mxu0
    %v185 = vsel %vm58, %v79, 0
    %v188 = vsel %vm58, %v81, 0
    %v191 = vsel %vm58, %v83, 0
    %193 = vmatprep.subr.mxu0 0.0
    %194 = vmatpush1.msra.mxu0 0.0
    %195 = vmatprep.subr.mxu0 0.0
    %196 = vmatpush1.msra.mxu0 0.0
    %197 = vmatprep.subr.mxu0 0.0
    %198 = vmatpush1.msra.mxu0 0.0
    %199 = vmatprep.subr.mxu0 0.0
    %200 = vmatpush1.msra.mxu0 0.0
    %201 = vmatprep.subr.mxu0 0.0
    %202 = vmatpush1.msra.mxu0 0.0
    %203 = vmatprep.subr.mxu0 0.0
    %204 = vmatpush1.msra.mxu0 0.0
    %205 = vmatprep.subr.mxu0 0.0
    %206 = vmatpush1.msra.mxu0 0.0
    %207 = vmatprep.subr.mxu0 0.0
    %208 = vmatpush1.msra.mxu0 0.0
    %209 = vmatprep.subr.mxu0 0.0
    %210 = vmatpush1.msra.mxu0 0.0
    %211 = vmatprep.subr.mxu0 0.0
    %212 = vmatpush1.msra.mxu0 0.0
    %213 = vmatprep.subr.mxu0 0.0
    %214 = vmatpush1.msra.mxu0 0.0
    %215 = vmatprep.subr.mxu0 0.0
    %216 = vmatpush1.msra.mxu0 0.0
    %217 = vmatprep.subr.mxu0 0.0
    %218 = vmatpush1.msra.mxu0 0.0
    %219 = vmatprep.subr.mxu0 0.0
    %220 = vmatpush1.msra.mxu0 0.0
    %221 = vmatprep.subr.mxu0 0.0
    %222 = vmatpush1.msra.mxu0 %v85
    %223 = vmatprep.subr.mxu0 0.0
    %224 = vmatpush1.msra.mxu0 %v84
    %225 = vmatprep.subr.mxu0 0.0
    %226 = vmatpush2.msra.mxu0 0.0
    %227 = vmatprep.subr.mxu0 0.0
    %228 = vmatpush2.msra.mxu0 0.0
    %229 = vmatprep.subr.mxu0 0.0
    %230 = vmatpush2.msra.mxu0 0.0
    %231 = vmatprep.subr.mxu0 0.0
    %232 = vmatpush2.msra.mxu0 0.0
    %233 = vmatprep.subr.mxu0 0.0
    %234 = vmatpush2.msra.mxu0 0.0
    %235 = vmatprep.subr.mxu0 0.0
    %236 = vmatpush2.msra.mxu0 0.0
    %237 = vmatprep.subr.mxu0 0.0
    %238 = vmatpush2.msra.mxu0 0.0
    %239 = vmatprep.subr.mxu0 0.0
    %240 = vmatpush2.msra.mxu0 0.0
    %241 = vmatprep.subr.mxu0 0.0
    %242 = vmatpush2.msra.mxu0 0.0
    %243 = vmatprep.subr.mxu0 0.0
    %244 = vmatpush2.msra.mxu0 0.0
    %245 = vmatprep.subr.mxu0 0.0
    %246 = vmatpush2.msra.mxu0 0.0
    %247 = vmatprep.subr.mxu0 0.0
    %248 = vmatpush2.msra.mxu0 0.0
    %249 = vmatprep.subr.mxu0 0.0
    %250 = vmatpush2.msra.mxu0 0.0
    %251 = vmatprep.subr.mxu0 0.0
    %252 = vmatpush2.msra.mxu0 0.0
    %253 = vmatprep.subr.mxu0 0.0
    %254 = vmatpush2.msra.mxu0 0.0
    %255 = vmatprep.subr.mxu0 0.0
    %256 = vmatpush2.msra.mxu0 0.0
    %257 = vmatprep.mubr.f32.mxu0 0.0
    %258 = vmatmul.mubr.f32.gmra.mxu0 %v185
    %v259 = vpop.f32.mrf.mxu0
    %v260 = vadd.f32 %v171, %v259
    %v261 = vpop.f32.mrf.mxu0
    %262 = vmatprep.mubr.f32.mxu0 0.0
    %263 = vmatmul.mubr.f32.gmra.mxu0 %v188
    %v264 = vpop.f32.mrf.mxu0
    %v265 = vadd.f32 %v176, %v264
    %v266 = vpop.f32.mrf.mxu0
    %267 = vmatprep.mubr.f32.mxu0 0.0
    %268 = vmatmul.mubr.f32.gmra.mxu0 %v191
    %v269 = vpop.f32.mrf.mxu0
    %v270 = vadd.f32 %v181, %v269
    %v271 = vpop.f32.mrf.mxu0
    %272 = vdwg.mxu0
    %s273 = scalar_lea.vmem [#allocation2], 2
    %v274 = vld [vmem:[%s273] ss:$2 sm:$0xff]
    %s275 = scalar_lea.vmem [#allocation2], 18
    %v276 = vld [vmem:[%s275] ss:$2 sm:$0xff]
    %s277 = scalar_lea.vmem [#allocation2], 34
    %v278 = vld [vmem:[%s277] ss:$2 sm:$0x7f]
    %s279 = scalar_lea.vmem [#allocation5], 32
    %v280 = vld [vmem:[%s279] sm:$0xff]
    %v281 = vld [vmem:[%s279 + $0x8] sm:$0xff]
    %v283 = vsel %vm58, %v274, 0
    %v286 = vsel %vm58, %v276, 0
    %v289 = vsel %vm58, %v278, 0
    %291 = vmatprep.subr.mxu0 0.0
    %292 = vmatpush1.msra.mxu0 0.0
    %293 = vmatprep.subr.mxu0 0.0
    %294 = vmatpush1.msra.mxu0 0.0
    %295 = vmatprep.subr.mxu0 0.0
    %296 = vmatpush1.msra.mxu0 0.0
    %297 = vmatprep.subr.mxu0 0.0
    %298 = vmatpush1.msra.mxu0 0.0
    %299 = vmatprep.subr.mxu0 0.0
    %300 = vmatpush1.msra.mxu0 0.0
    %301 = vmatprep.subr.mxu0 0.0
    %302 = vmatpush1.msra.mxu0 0.0
    %303 = vmatprep.subr.mxu0 0.0
    %304 = vmatpush1.msra.mxu0 0.0
    %305 = vmatprep.subr.mxu0 0.0
    %306 = vmatpush1.msra.mxu0 0.0
    %307 = vmatprep.subr.mxu0 0.0
    %308 = vmatpush1.msra.mxu0 0.0
    %309 = vmatprep.subr.mxu0 0.0
    %310 = vmatpush1.msra.mxu0 0.0
    %311 = vmatprep.subr.mxu0 0.0
    %312 = vmatpush1.msra.mxu0 0.0
    %313 = vmatprep.subr.mxu0 0.0
    %314 = vmatpush1.msra.mxu0 0.0
    %315 = vmatprep.subr.mxu0 0.0
    %316 = vmatpush1.msra.mxu0 0.0
    %317 = vmatprep.subr.mxu0 0.0
    %318 = vmatpush1.msra.mxu0 0.0
    %319 = vmatprep.subr.mxu0 0.0
    %320 = vmatpush1.msra.mxu0 %v281
    %321 = vmatprep.subr.mxu0 0.0
    %322 = vmatpush1.msra.mxu0 %v280
    %323 = vmatprep.subr.mxu0 0.0
    %324 = vmatpush2.msra.mxu0 0.0
    %325 = vmatprep.subr.mxu0 0.0
    %326 = vmatpush2.msra.mxu0 0.0
    %327 = vmatprep.subr.mxu0 0.0
    %328 = vmatpush2.msra.mxu0 0.0
    %329 = vmatprep.subr.mxu0 0.0
    %330 = vmatpush2.msra.mxu0 0.0
    %331 = vmatprep.subr.mxu0 0.0
    %332 = vmatpush2.msra.mxu0 0.0
    %333 = vmatprep.subr.mxu0 0.0
    %334 = vmatpush2.msra.mxu0 0.0
    %335 = vmatprep.subr.mxu0 0.0
    %336 = vmatpush2.msra.mxu0 0.0
    %337 = vmatprep.subr.mxu0 0.0
    %338 = vmatpush2.msra.mxu0 0.0
    %339 = vmatprep.subr.mxu0 0.0
    %340 = vmatpush2.msra.mxu0 0.0
    %341 = vmatprep.subr.mxu0 0.0
    %342 = vmatpush2.msra.mxu0 0.0
    %343 = vmatprep.subr.mxu0 0.0
    %344 = vmatpush2.msra.mxu0 0.0
    %345 = vmatprep.subr.mxu0 0.0
    %346 = vmatpush2.msra.mxu0 0.0
    %347 = vmatprep.subr.mxu0 0.0
    %348 = vmatpush2.msra.mxu0 0.0
    %349 = vmatprep.subr.mxu0 0.0
    %350 = vmatpush2.msra.mxu0 0.0
    %351 = vmatprep.subr.mxu0 0.0
    %352 = vmatpush2.msra.mxu0 0.0
    %353 = vmatprep.subr.mxu0 0.0
    %354 = vmatpush2.msra.mxu0 0.0
    %355 = vmatprep.mubr.f32.mxu0 0.0
    %356 = vmatmul.mubr.f32.gmra.mxu0 %v283
    %v357 = vpop.f32.mrf.mxu0
    %v358 = vadd.f32 0.0, %v357
    %v359 = vpop.f32.mrf.mxu0
    %360 = vmatprep.mubr.f32.mxu0 0.0
    %361 = vmatmul.mubr.f32.gmra.mxu0 %v286
    %v362 = vpop.f32.mrf.mxu0
    %v363 = vadd.f32 0.0, %v362
    %v364 = vpop.f32.mrf.mxu0
    %365 = vmatprep.mubr.f32.mxu0 0.0
    %366 = vmatmul.mubr.f32.gmra.mxu0 %v289
    %v367 = vpop.f32.mrf.mxu0
    %v368 = vadd.f32 0.0, %v367
    %v369 = vpop.f32.mrf.mxu0
    %370 = vdwg.mxu0
    %v371 = vadd.f32 %v260, %v358
    %v372 = vadd.f32 %v265, %v363
    %v373 = vadd.f32 %v270, %v368
    %v374 = vld [vmem:[%s2] sm:$0x1]
    %v376 = vlaneseq
    %v377 = vshrl.u32 %v376, 7
    %v378 = vsub.s32 0, %v377
    %v379 = vrot.slane %v374, %v378
    %v381 = vadd.f32 %v371, %v379
    %v382 = vadd.f32 %v372, %v379
    %v383 = vadd.f32 %v373, %v379
    %v384 = vmax.f32 %v381, 0.0
    %v385 = vmax.f32 %v382, 0.0
    %v386 = vmax.f32 %v383, 0.0
    %vm387 = vcmask 261120
    %388 = vst.msk [vmem:[#allocation3] sm:$0xff] %vm387, 0.0
    %389 = vst.msk [vmem:[#allocation3 + $0x8] sm:$0xff] %vm387, 0.0
    %390 = vst.msk [vmem:[#allocation3 + $0x10] sm:$0xff] %vm387, 0.0
    %vm391 = vcmask 253952
    %392 = vst.msk [vmem:[#allocation3 + $0x18] sm:$0x1] %vm391, 0.0
    %393 = vst.msk [vmem:[#allocation3 + $0x1] sm:$0xff] %vm387, %v384
    %394 = vst.msk [vmem:[#allocation3 + $0x9] sm:$0xff] %vm387, %v385
    %vm395 = vcmask 260096
    %396 = vst.msk [vmem:[#allocation3 + $0x11] sm:$0x7f] %vm395, %v386
    %v397 = vld [vmem:[#allocation3] ss:$2 sm:$0xff]
    %s398 = scalar_lea.vmem [#allocation3], 16
    %v399 = vld [vmem:[%s398] ss:$2 sm:$0xf]
    %v400 = vld [vmem:[#allocation8] sm:$0xff]
    %v401 = vld [vmem:[#allocation8 + $0x8] sm:$0xff]
    %v402 = vld [vmem:[#allocation8 + $0x10] sm:$0xff]
    %v403 = vld [vmem:[#allocation8 + $0x18] sm:$0xff]
    %s404 = scalar_lea.vmem [#allocation3], 1
    %v405 = vld [vmem:[%s404] ss:$2 sm:$0xff]
    %s406 = scalar_lea.vmem [#allocation3], 17
    %v407 = vld [vmem:[%s406] ss:$2 sm:$0xf]
    %s408 = scalar_lea.vmem [#allocation8], 32
    %v409 = vld [vmem:[%s408] sm:$0xff]
    %v410 = vld [vmem:[%s408 + $0x8] sm:$0xff]
    %v411 = vld [vmem:[%s408 + $0x10] sm:$0xff]
    %v412 = vld [vmem:[%s408 + $0x18] sm:$0xff]
    %v414 = vsel %vm387, %v405, 0
    %v417 = vsel %vm387, %v407, 0
    %419 = vmatprep.subr.mxu0 0.0
    %420 = vmatpush1.msra.mxu0 0.0
    %421 = vmatprep.subr.mxu0 0.0
    %422 = vmatpush1.msra.mxu0 0.0
    %423 = vmatprep.subr.mxu0 0.0
    %424 = vmatpush1.msra.mxu0 0.0
    %425 = vmatprep.subr.mxu0 0.0
    %426 = vmatpush1.msra.mxu0 0.0
    %427 = vmatprep.subr.mxu0 0.0
    %428 = vmatpush1.msra.mxu0 0.0
    %429 = vmatprep.subr.mxu0 0.0
    %430 = vmatpush1.msra.mxu0 0.0
    %431 = vmatprep.subr.mxu0 0.0
    %432 = vmatpush1.msra.mxu0 0.0
    %433 = vmatprep.subr.mxu0 0.0
    %434 = vmatpush1.msra.mxu0 0.0
    %435 = vmatprep.subr.mxu0 0.0
    %436 = vmatpush1.msra.mxu0 0.0
    %437 = vmatprep.subr.mxu0 0.0
    %438 = vmatpush1.msra.mxu0 0.0
    %439 = vmatprep.subr.mxu0 0.0
    %440 = vmatpush1.msra.mxu0 0.0
    %441 = vmatprep.subr.mxu0 0.0
    %442 = vmatpush1.msra.mxu0 0.0
    %443 = vmatprep.subr.mxu0 0.0
    %444 = vmatpush1.msra.mxu0 %v412
    %445 = vmatprep.subr.mxu0 0.0
    %446 = vmatpush1.msra.mxu0 %v411
    %447 = vmatprep.subr.mxu0 0.0
    %448 = vmatpush1.msra.mxu0 %v410
    %449 = vmatprep.subr.mxu0 0.0
    %450 = vmatpush1.msra.mxu0 %v409
    %451 = vmatprep.subr.mxu0 0.0
    %452 = vmatpush2.msra.mxu0 0.0
    %453 = vmatprep.subr.mxu0 0.0
    %454 = vmatpush2.msra.mxu0 0.0
    %455 = vmatprep.subr.mxu0 0.0
    %456 = vmatpush2.msra.mxu0 0.0
    %457 = vmatprep.subr.mxu0 0.0
    %458 = vmatpush2.msra.mxu0 0.0
    %459 = vmatprep.subr.mxu0 0.0
    %460 = vmatpush2.msra.mxu0 0.0
    %461 = vmatprep.subr.mxu0 0.0
    %462 = vmatpush2.msra.mxu0 0.0
    %463 = vmatprep.subr.mxu0 0.0
    %464 = vmatpush2.msra.mxu0 0.0
    %465 = vmatprep.subr.mxu0 0.0
    %466 = vmatpush2.msra.mxu0 0.0
    %467 = vmatprep.subr.mxu0 0.0
    %468 = vmatpush2.msra.mxu0 0.0
    %469 = vmatprep.subr.mxu0 0.0
    %470 = vmatpush2.msra.mxu0 0.0
    %471 = vmatprep.subr.mxu0 0.0
    %472 = vmatpush2.msra.mxu0 0.0
    %473 = vmatprep.subr.mxu0 0.0
    %474 = vmatpush2.msra.mxu0 0.0
    %475 = vmatprep.subr.mxu0 0.0
    %476 = vmatpush2.msra.mxu0 0.0
    %477 = vmatprep.subr.mxu0 0.0
    %478 = vmatpush2.msra.mxu0 0.0
    %479 = vmatprep.subr.mxu0 0.0
    %480 = vmatpush2.msra.mxu0 0.0
    %481 = vmatprep.subr.mxu0 0.0
    %482 = vmatpush2.msra.mxu0 0.0
    %483 = vmatprep.mubr.f32.mxu0 0.0
    %484 = vmatmul.mubr.f32.gmra.mxu0 %v414
    %v485 = vpop.f32.mrf.mxu0
    %v486 = vadd.f32 0.0, %v485
    %v487 = vpop.f32.mrf.mxu0
    %488 = vmatprep.mubr.f32.mxu0 0.0
    %489 = vmatmul.mubr.f32.gmra.mxu0 %v417
    %v490 = vpop.f32.mrf.mxu0
    %v491 = vadd.f32 0.0, %v490
    %v492 = vpop.f32.mrf.mxu0
    %493 = vdwg.mxu0
    %v495 = vsel %vm387, %v397, 0
    %v498 = vsel %vm387, %v399, 0
    %500 = vmatprep.subr.mxu0 0.0
    %501 = vmatpush1.msra.mxu0 0.0
    %502 = vmatprep.subr.mxu0 0.0
    %503 = vmatpush1.msra.mxu0 0.0
    %504 = vmatprep.subr.mxu0 0.0
    %505 = vmatpush1.msra.mxu0 0.0
    %506 = vmatprep.subr.mxu0 0.0
    %507 = vmatpush1.msra.mxu0 0.0
    %508 = vmatprep.subr.mxu0 0.0
    %509 = vmatpush1.msra.mxu0 0.0
    %510 = vmatprep.subr.mxu0 0.0
    %511 = vmatpush1.msra.mxu0 0.0
    %512 = vmatprep.subr.mxu0 0.0
    %513 = vmatpush1.msra.mxu0 0.0
    %514 = vmatprep.subr.mxu0 0.0
    %515 = vmatpush1.msra.mxu0 0.0
    %516 = vmatprep.subr.mxu0 0.0
    %517 = vmatpush1.msra.mxu0 0.0
    %518 = vmatprep.subr.mxu0 0.0
    %519 = vmatpush1.msra.mxu0 0.0
    %520 = vmatprep.subr.mxu0 0.0
    %521 = vmatpush1.msra.mxu0 0.0
    %522 = vmatprep.subr.mxu0 0.0
    %523 = vmatpush1.msra.mxu0 0.0
    %524 = vmatprep.subr.mxu0 0.0
    %525 = vmatpush1.msra.mxu0 %v403
    %526 = vmatprep.subr.mxu0 0.0
    %527 = vmatpush1.msra.mxu0 %v402
    %528 = vmatprep.subr.mxu0 0.0
    %529 = vmatpush1.msra.mxu0 %v401
    %530 = vmatprep.subr.mxu0 0.0
    %531 = vmatpush1.msra.mxu0 %v400
    %532 = vmatprep.subr.mxu0 0.0
    %533 = vmatpush2.msra.mxu0 0.0
    %534 = vmatprep.subr.mxu0 0.0
    %535 = vmatpush2.msra.mxu0 0.0
    %536 = vmatprep.subr.mxu0 0.0
    %537 = vmatpush2.msra.mxu0 0.0
    %538 = vmatprep.subr.mxu0 0.0
    %539 = vmatpush2.msra.mxu0 0.0
    %540 = vmatprep.subr.mxu0 0.0
    %541 = vmatpush2.msra.mxu0 0.0
    %542 = vmatprep.subr.mxu0 0.0
    %543 = vmatpush2.msra.mxu0 0.0
    %544 = vmatprep.subr.mxu0 0.0
    %545 = vmatpush2.msra.mxu0 0.0
    %546 = vmatprep.subr.mxu0 0.0
    %547 = vmatpush2.msra.mxu0 0.0
    %548 = vmatprep.subr.mxu0 0.0
    %549 = vmatpush2.msra.mxu0 0.0
    %550 = vmatprep.subr.mxu0 0.0
    %551 = vmatpush2.msra.mxu0 0.0
    %552 = vmatprep.subr.mxu0 0.0
    %553 = vmatpush2.msra.mxu0 0.0
    %554 = vmatprep.subr.mxu0 0.0
    %555 = vmatpush2.msra.mxu0 0.0
    %556 = vmatprep.subr.mxu0 0.0
    %557 = vmatpush2.msra.mxu0 0.0
    %558 = vmatprep.subr.mxu0 0.0
    %559 = vmatpush2.msra.mxu0 0.0
    %560 = vmatprep.subr.mxu0 0.0
    %561 = vmatpush2.msra.mxu0 0.0
    %562 = vmatprep.subr.mxu0 0.0
    %563 = vmatpush2.msra.mxu0 0.0
    %564 = vmatprep.mubr.f32.mxu0 0.0
    %565 = vmatmul.mubr.f32.gmra.mxu0 %v495
    %v566 = vpop.f32.mrf.mxu0
    %v567 = vadd.f32 %v486, %v566
    %v568 = vpop.f32.mrf.mxu0
    %569 = vmatprep.mubr.f32.mxu0 0.0
    %570 = vmatmul.mubr.f32.gmra.mxu0 %v498
    %v571 = vpop.f32.mrf.mxu0
    %v572 = vadd.f32 %v491, %v571
    %v573 = vpop.f32.mrf.mxu0
    %574 = vdwg.mxu0
    %s575 = scalar_lea.vmem [#allocation3], 2
    %v576 = vld [vmem:[%s575] ss:$2 sm:$0xff]
    %s577 = scalar_lea.vmem [#allocation3], 18
    %v578 = vld [vmem:[%s577] ss:$2 sm:$0xf]
    %s579 = scalar_lea.vmem [#allocation8], 64
    %v580 = vld [vmem:[%s579] sm:$0xff]
    %v581 = vld [vmem:[%s579 + $0x8] sm:$0xff]
    %v582 = vld [vmem:[%s579 + $0x10] sm:$0xff]
    %v583 = vld [vmem:[%s579 + $0x18] sm:$0xff]
    %v585 = vsel %vm387, %v576, 0
    %v588 = vsel %vm387, %v578, 0
    %590 = vmatprep.subr.mxu0 0.0
    %591 = vmatpush1.msra.mxu0 0.0
    %592 = vmatprep.subr.mxu0 0.0
    %593 = vmatpush1.msra.mxu0 0.0
    %594 = vmatprep.subr.mxu0 0.0
    %595 = vmatpush1.msra.mxu0 0.0
    %596 = vmatprep.subr.mxu0 0.0
    %597 = vmatpush1.msra.mxu0 0.0
    %598 = vmatprep.subr.mxu0 0.0
    %599 = vmatpush1.msra.mxu0 0.0
    %600 = vmatprep.subr.mxu0 0.0
    %601 = vmatpush1.msra.mxu0 0.0
    %602 = vmatprep.subr.mxu0 0.0
    %603 = vmatpush1.msra.mxu0 0.0
    %604 = vmatprep.subr.mxu0 0.0
    %605 = vmatpush1.msra.mxu0 0.0
    %606 = vmatprep.subr.mxu0 0.0
    %607 = vmatpush1.msra.mxu0 0.0
    %608 = vmatprep.subr.mxu0 0.0
    %609 = vmatpush1.msra.mxu0 0.0
    %610 = vmatprep.subr.mxu0 0.0
    %611 = vmatpush1.msra.mxu0 0.0
    %612 = vmatprep.subr.mxu0 0.0
    %613 = vmatpush1.msra.mxu0 0.0
    %614 = vmatprep.subr.mxu0 0.0
    %615 = vmatpush1.msra.mxu0 %v583
    %616 = vmatprep.subr.mxu0 0.0
    %617 = vmatpush1.msra.mxu0 %v582
    %618 = vmatprep.subr.mxu0 0.0
    %619 = vmatpush1.msra.mxu0 %v581
    %620 = vmatprep.subr.mxu0 0.0
    %621 = vmatpush1.msra.mxu0 %v580
    %622 = vmatprep.subr.mxu0 0.0
    %623 = vmatpush2.msra.mxu0 0.0
    %624 = vmatprep.subr.mxu0 0.0
    %625 = vmatpush2.msra.mxu0 0.0
    %626 = vmatprep.subr.mxu0 0.0
    %627 = vmatpush2.msra.mxu0 0.0
    %628 = vmatprep.subr.mxu0 0.0
    %629 = vmatpush2.msra.mxu0 0.0
    %630 = vmatprep.subr.mxu0 0.0
    %631 = vmatpush2.msra.mxu0 0.0
    %632 = vmatprep.subr.mxu0 0.0
    %633 = vmatpush2.msra.mxu0 0.0
    %634 = vmatprep.subr.mxu0 0.0
    %635 = vmatpush2.msra.mxu0 0.0
    %636 = vmatprep.subr.mxu0 0.0
    %637 = vmatpush2.msra.mxu0 0.0
    %638 = vmatprep.subr.mxu0 0.0
    %639 = vmatpush2.msra.mxu0 0.0
    %640 = vmatprep.subr.mxu0 0.0
    %641 = vmatpush2.msra.mxu0 0.0
    %642 = vmatprep.subr.mxu0 0.0
    %643 = vmatpush2.msra.mxu0 0.0
    %644 = vmatprep.subr.mxu0 0.0
    %645 = vmatpush2.msra.mxu0 0.0
    %646 = vmatprep.subr.mxu0 0.0
    %647 = vmatpush2.msra.mxu0 0.0
    %648 = vmatprep.subr.mxu0 0.0
    %649 = vmatpush2.msra.mxu0 0.0
    %650 = vmatprep.subr.mxu0 0.0
    %651 = vmatpush2.msra.mxu0 0.0
    %652 = vmatprep.subr.mxu0 0.0
    %653 = vmatpush2.msra.mxu0 0.0
    %654 = vmatprep.mubr.f32.mxu0 0.0
    %655 = vmatmul.mubr.f32.gmra.mxu0 %v585
    %v656 = vpop.f32.mrf.mxu0
    %v657 = vadd.f32 0.0, %v656
    %v658 = vpop.f32.mrf.mxu0
    %659 = vmatprep.mubr.f32.mxu0 0.0
    %660 = vmatmul.mubr.f32.gmra.mxu0 %v588
    %v661 = vpop.f32.mrf.mxu0
    %v662 = vadd.f32 0.0, %v661
    %v663 = vpop.f32.mrf.mxu0
    %664 = vdwg.mxu0
    %v665 = vadd.f32 %v567, %v657
    %v666 = vadd.f32 %v572, %v662
    %v667 = vld [vmem:[%s4] sm:$0x1]
    %v669 = vlaneseq
    %v670 = vshrl.u32 %v669, 7
    %v671 = vsub.s32 0, %v670
    %v672 = vrot.slane %v667, %v671
    %v674 = vadd.f32 %v665, %v672
    %v675 = vadd.f32 %v666, %v672
    %v676 = vmax.f32 %v674, 0.0
    %v677 = vmax.f32 %v675, 0.0
    %v678 = vmax.f32 %v667, 0.0
    %vm679 = vcmask 523264
    %v680 = vsel %vm679, %v676, 0.0
    %vm681 = vcmask 519168
    %v682 = vsel %vm681, %v677, 0.0
    %v683 = vadd.f32 %v680, %v682
    %v684 = vrot.slane %v683, 4
    %v685 = vadd.f32 %v683, %v684
    %v686 = vrot.slane %v685, 2
    %v687 = vadd.f32 %v685, %v686
    %v688 = vrot.slane %v687, 1
    %v689 = vadd.f32 %v687, %v688
    %v690 = vmul.f32 %v678, 12.0
    %v691 = vadd.f32 %v689, %v690
    %v692 = vmul.f32 %v691, 0.041666668
    %v693 = vld [vmem:[%s5] sm:$0x1]
    %v694 = vmul.f32 %v692, %v693
    %vm695 = vcmask 516096
    %v696 = vsel %vm695, %v694, 0.0
    %697 = vadd.xlane.f32.xlu0 %v696
    %v698 = vpop.xlane.xlu0 %697
    %s699 = sld [smem:[#allocation4]]
    %v700 = vstv %s699
    %v701 = vadd.f32 %v698, %v700
    %v703 = vlaneseq
    %v704 = vshrl.u32 %v703, 7
    %v705 = vsub.s32 0, %v704
    %v706 = vrot.slane %v701, %v705
    %708 = vst [vmem:[#allocation10] sm:$0xff] %v706
    %709 = vst [vmem:[#allocation10 + $0x8] sm:$0xff] %v706
    // Predicated region
    $region38: #{tpu_custom_call.1} parent=1 // pred_check
      _
    $region39: #{tpu_custom_call.1} parent=1 // pred_check_branch
      %711 = sbr.rel (0) target = $region41
    $region40: #{tpu_custom_call.1} parent=1 // pred_region
      %s713 = ssub.s32 256, 256
      %714 = vsyncadd [#allocation7], %s713
      %s716 = sshll.u32 [#allocation10], 4
      %s717 = int_to_ptr.vmem [resolvable:$true] %s716
      %719 = dma.vmem_to_hbm [thread:$0]  %s717, 256, %s7, [#allocation7]
    $region41: #{tpu_custom_call.1} parent=1 // pred_fallthru
      _
    // Predicated region
    $region42: #{tpu_custom_call.1} parent=1 // pred_check
      _
    $region43: #{tpu_custom_call.1} parent=1 // pred_check_branch
      %721 = sbr.rel (0) target = $region45
    $region44: #{tpu_custom_call.1} parent=1 // pred_region
      %722 = dma.done [#allocation7], 256
    $region45: #{tpu_custom_call.1} parent=1 // pred_fallthru
      _
    %723 = vsyncpa [#allocation6], 1
    %724 = vsyncpa [#allocation9], 1
    %725 = vsyncpa [#allocation7], 1

</llo_original>
